<compile_context>
chip_gen: v7x
topology: tpu7x:2x2x1
jax: 0.10.0
libtpu: 0.0.40
codegen_flags: <defaults>
</compile_context>

<pallas_src>
import math
import functools

import jax
import jax.numpy as jnp
from jax.experimental import pallas as pl
from jax.experimental.pallas import tpu as pltpu


# ---------------------------------------------------------------------------
# Pallas kernel: fused EqualLinear(style) -> InstanceNorm2d -> gamma*x_hat + beta
# ---------------------------------------------------------------------------

def adain_kernel(x_ref, st_ref, wg_ref, wb_ref, bg_ref, bb_ref, o_ref, *, eps):
    """One (batch, channel-tile) grid step.

    x_ref : (1, tc, HW)  activations; HW on the 128-lane axis
    st_ref: (1, S, 1)    style vector for this batch element (column form)
    wg_ref: (tc, S)      gamma rows of the equal-lr-scaled style weight
    wb_ref: (tc, S)      beta  rows of the equal-lr-scaled style weight
    bg_ref: (tc, 1)      gamma bias
    bb_ref: (tc, 1)      beta  bias
    o_ref : (1, tc, HW)
    """
    x = x_ref[0].astype(jnp.float32)                      # (tc, HW)
    hw = x.shape[1]
    inv_n = 1.0 / hw

    # One-pass instance-norm statistics over the spatial (lane) axis, per channel.
    mean = jnp.sum(x, axis=1, keepdims=True) * inv_n      # (tc, 1)
    ex2 = jnp.sum(x * x, axis=1, keepdims=True) * inv_n   # (tc, 1)
    var = jnp.maximum(ex2 - mean * mean, 0.0)             # biased, as nn.InstanceNorm2d
    inv_std = jax.lax.rsqrt(var + eps)                    # (tc, 1)

    # Style affine for this channel tile, produced directly as (tc, 1) columns
    # (no in-kernel chunk slicing or transpose relayout).
    s = st_ref[0].astype(jnp.float32)                     # (S, 1)
    gamma = jnp.dot(wg_ref[...], s,
                    preferred_element_type=jnp.float32) + bg_ref[...]   # (tc, 1)
    beta = jnp.dot(wb_ref[...], s,
                   preferred_element_type=jnp.float32) + bb_ref[...]    # (tc, 1)

    scale = gamma * inv_std                               # (tc, 1)
    shift = beta - mean * scale                           # (tc, 1)
    o_ref[0] = (x * scale + shift).astype(o_ref.dtype)


# ---------------------------------------------------------------------------
# Wrapper
# ---------------------------------------------------------------------------

def _pick_channel_tile(C, HW, itemsize, budget_bytes=6 * 1024 * 1024):
    """Largest divisor of C that is a multiple of 8 (or C itself) and fits the
    per-block VMEM budget (so 2x double-buffered in + out stays under ~24 MiB)."""
    divisors = [d for d in range(1, C + 1)
                if C % d == 0 and (d % 8 == 0 or d == C)]
    fitting = [d for d in divisors if d * HW * itemsize <= budget_bytes]
    return max(fitting) if fitting else min(divisors)


@jax.jit
def adaptive_instance_norm(x_nchw, style, style_weight, style_bias):
    """x_nchw: (B, C, H, W); style: (B, S);
    style_weight: (2C, S) (raw, equal-lr scaling applied here); style_bias: (2C,)."""
    B, C, H, W = x_nchw.shape
    S = style.shape[1]
    HW = H * W
    eps = 1e-5

    # EqualLinear equal-lr multiplier: fan_in = style_dim.
    mult = math.sqrt(2.0 / S)
    w = style_weight.astype(jnp.float32) * mult           # (2C, S)
    wg = w[:C]                                            # (C, S)  gamma rows
    wb = w[C:]                                            # (C, S)  beta rows
    bg = style_bias[:C].astype(jnp.float32).reshape(C, 1)
    bb = style_bias[C:].astype(jnp.float32).reshape(C, 1)

    x3 = x_nchw.reshape(B, C, HW)                         # free reshape (contiguous)
    st = style.reshape(B, S, 1)

    tc = _pick_channel_tile(C, HW, x3.dtype.itemsize)
    grid = (B, C // tc)

    # x + out blocks, double-buffered, plus small style/weight blocks and headroom.
    compute_bytes = tc * HW * x3.dtype.itemsize
    vmem_limit = int(min(64 * 1024 * 1024,
                         max(32 * 1024 * 1024, 4 * compute_bytes + (4 << 20))))

    out = pl.pallas_call(
        functools.partial(adain_kernel, eps=eps),
        out_shape=jax.ShapeDtypeStruct((B, C, HW), x_nchw.dtype),
        grid=grid,
        in_specs=[
            pl.BlockSpec((1, tc, HW), lambda b, c: (b, c, 0)),   # x tile
            pl.BlockSpec((1, S, 1), lambda b, c: (b, 0, 0)),     # style column
            pl.BlockSpec((tc, S), lambda b, c: (c, 0)),          # gamma weight rows
            pl.BlockSpec((tc, S), lambda b, c: (c, 0)),          # beta  weight rows
            pl.BlockSpec((tc, 1), lambda b, c: (c, 0)),          # gamma bias
            pl.BlockSpec((tc, 1), lambda b, c: (c, 0)),          # beta  bias
        ],
        out_specs=pl.BlockSpec((1, tc, HW), lambda b, c: (b, c, 0)),
        compiler_params=pltpu.CompilerParams(
            dimension_semantics=("parallel", "parallel"),
            vmem_limit_bytes=vmem_limit,
        ),
    )(x3, st, wg, wb, bg, bb)

    return out.reshape(B, C, H, W)


# ---------------------------------------------------------------------------
# Pure-JAX reference (mirrors the PyTorch module) and parameter init
# ---------------------------------------------------------------------------

def adain_reference(x, style, style_weight, style_bias, eps=1e-5):
    B, C, H, W = x.shape
    S = style.shape[1]
    gb = style @ (style_weight * math.sqrt(2.0 / S)).T + style_bias   # (B, 2C)
    gamma = gb[:, :C].reshape(B, C, 1, 1)
    beta = gb[:, C:].reshape(B, C, 1, 1)
    mean = x.mean(axis=(2, 3), keepdims=True)
    var = ((x - mean) ** 2).mean(axis=(2, 3), keepdims=True)          # biased
    return gamma * (x - mean) / jnp.sqrt(var + eps) + beta


def init_params(key, in_channel, style_dim):
    C = in_channel
    # EqualLinear(style_dim, 2C): weight ~ N(0,1); bias[:C] = 1, bias[C:] = 0
    style_weight = jax.random.normal(key, (2 * C, style_dim), jnp.float32)
    style_bias = jnp.concatenate([jnp.ones((C,), jnp.float32),
                                  jnp.zeros((C,), jnp.float32)])
    return style_weight, style_bias


if __name__ == "__main__":
    B, C, H, W, style_dim = 2, 8, 16, 16, 32

    key = jax.random.PRNGKey(0)
    k_x, k_s, k_w = jax.random.split(key, 3)

    x = jax.random.normal(k_x, (B, C, H, W), jnp.float32)      # NCHW
    style = jax.random.normal(k_s, (B, style_dim), jnp.float32)
    style_weight, style_bias = init_params(k_w, C, style_dim)

    out = adaptive_instance_norm(x, style, style_weight, style_bias)
    out = jax.block_until_ready(out)

    assert out.shape == (B, C, H, W), out.shape
    assert bool(jnp.all(jnp.isfinite(out)))

    ref = adain_reference(x, style, style_weight, style_bias)
    assert bool(jnp.allclose(out, ref, atol=2e-3, rtol=2e-3)), \
        float(jnp.max(jnp.abs(out - ref)))

    print("KERNEL_OK")
</pallas_src>

<mosaic_0001>
module attributes {stable_mosaic.version = 11 : i64} {
  func.func @adain_kernel(%arg0: i32, %arg1: i32, %arg2: memref<1x8x256xf32, #tpu.memory_space<vmem>>, %arg3: memref<1x32x1xf32, #tpu.memory_space<vmem>>, %arg4: memref<8x32xf32, #tpu.memory_space<vmem>>, %arg5: memref<8x32xf32, #tpu.memory_space<vmem>>, %arg6: memref<8x1xf32, #tpu.memory_space<vmem>>, %arg7: memref<8x1xf32, #tpu.memory_space<vmem>>, %arg8: memref<1x8x256xf32, #tpu.memory_space<vmem>>) attributes {dimension_semantics = [#tpu.dimension_semantics<parallel>, #tpu.dimension_semantics<parallel>], iteration_bounds = array<i64: 2, 1>, scalar_prefetch = 0 : i64, scratch_operands = 0 : i64, tpu.core_type = #tpu.core_type<tc>, window_params = [{transform_indices = @transform_0, window_bounds = array<i64: 1, 8, 256>}, {transform_indices = @transform_1, window_bounds = array<i64: 1, 32, 1>}, {transform_indices = @transform_2, window_bounds = array<i64: 8, 32>}, {transform_indices = @transform_3, window_bounds = array<i64: 8, 32>}, {transform_indices = @transform_4, window_bounds = array<i64: 8, 1>}, {transform_indices = @transform_5, window_bounds = array<i64: 8, 1>}, {transform_indices = @transform_6, window_bounds = array<i64: 1, 8, 256>}]} {
    %c0 = arith.constant 0 : index
    %c0_0 = arith.constant 0 : index
    %c0_1 = arith.constant 0 : index
    %0 = vector.load %arg2[%c0, %c0_0, %c0_1] : memref<1x8x256xf32, #tpu.memory_space<vmem>>, vector<1x8x256xf32>
    %1 = vector.shape_cast %0 : vector<1x8x256xf32> to vector<8x256xf32>
    %cst = arith.constant dense<0.000000e+00> : vector<8xf32>
    %2 = vector.multi_reduction <add>, %1, %cst [1] : vector<8x256xf32> to vector<8xf32>
    %3 = vector.shape_cast %2 : vector<8xf32> to vector<8x1xf32>
    %cst_2 = arith.constant 3.906250e-03 : f32
    %4 = vector.broadcast %cst_2 : f32 to vector<8x1xf32>
    %5 = arith.mulf %3, %4 : vector<8x1xf32>
    %6 = arith.mulf %1, %1 : vector<8x256xf32>
    %cst_3 = arith.constant dense<0.000000e+00> : vector<8xf32>
    %7 = vector.multi_reduction <add>, %6, %cst_3 [1] : vector<8x256xf32> to vector<8xf32>
    %8 = vector.shape_cast %7 : vector<8xf32> to vector<8x1xf32>
    %cst_4 = arith.constant 3.906250e-03 : f32
    %9 = vector.broadcast %cst_4 : f32 to vector<8x1xf32>
    %10 = arith.mulf %8, %9 : vector<8x1xf32>
    %11 = arith.mulf %5, %5 : vector<8x1xf32>
    %12 = arith.subf %10, %11 : vector<8x1xf32>
    %cst_5 = arith.constant 0.000000e+00 : f32
    %13 = vector.broadcast %cst_5 : f32 to vector<8x1xf32>
    %14 = arith.maximumf %12, %13 : vector<8x1xf32>
    %cst_6 = arith.constant 9.99999974E-6 : f32
    %15 = vector.broadcast %cst_6 : f32 to vector<8x1xf32>
    %16 = arith.addf %14, %15 : vector<8x1xf32>
    %17 = math.rsqrt %16 : vector<8x1xf32>
    %c0_7 = arith.constant 0 : index
    %c0_8 = arith.constant 0 : index
    %c0_9 = arith.constant 0 : index
    %18 = vector.load %arg3[%c0_7, %c0_8, %c0_9] : memref<1x32x1xf32, #tpu.memory_space<vmem>>, vector<1x32x1xf32>
    %19 = vector.shape_cast %18 : vector<1x32x1xf32> to vector<32x1xf32>
    %c0_10 = arith.constant 0 : index
    %c0_11 = arith.constant 0 : index
    %20 = vector.load %arg4[%c0_10, %c0_11] : memref<8x32xf32, #tpu.memory_space<vmem>>, vector<8x32xf32>
    %cst_12 = arith.constant dense<0.000000e+00> : vector<8x1xf32>
    %21 = tpu.matmul %20, %19, %cst_12 {dimension_numbers = #tpu.dot_dimension_numbers<[1], [0], [0], [1], [0, 0, 1, 1], [], []>} : vector<8x32xf32>, vector<32x1xf32>, vector<8x1xf32> -> vector<8x1xf32>
    %c0_13 = arith.constant 0 : index
    %c0_14 = arith.constant 0 : index
    %22 = vector.load %arg6[%c0_13, %c0_14] : memref<8x1xf32, #tpu.memory_space<vmem>>, vector<8x1xf32>
    %23 = arith.addf %21, %22 : vector<8x1xf32>
    %c0_15 = arith.constant 0 : index
    %c0_16 = arith.constant 0 : index
    %24 = vector.load %arg5[%c0_15, %c0_16] : memref<8x32xf32, #tpu.memory_space<vmem>>, vector<8x32xf32>
    %cst_17 = arith.constant dense<0.000000e+00> : vector<8x1xf32>
    %25 = tpu.matmul %24, %19, %cst_17 {dimension_numbers = #tpu.dot_dimension_numbers<[1], [0], [0], [1], [0, 0, 1, 1], [], []>} : vector<8x32xf32>, vector<32x1xf32>, vector<8x1xf32> -> vector<8x1xf32>
    %c0_18 = arith.constant 0 : index
    %c0_19 = arith.constant 0 : index
    %26 = vector.load %arg7[%c0_18, %c0_19] : memref<8x1xf32, #tpu.memory_space<vmem>>, vector<8x1xf32>
    %27 = arith.addf %25, %26 : vector<8x1xf32>
    %28 = arith.mulf %23, %17 : vector<8x1xf32>
    %29 = arith.mulf %5, %28 : vector<8x1xf32>
    %30 = arith.subf %27, %29 : vector<8x1xf32>
    %31 = vector.broadcast %28 : vector<8x1xf32> to vector<8x256xf32>
    %32 = arith.mulf %1, %31 : vector<8x256xf32>
    %33 = vector.broadcast %30 : vector<8x1xf32> to vector<8x256xf32>
    %34 = arith.addf %32, %33 : vector<8x256xf32>
    %c0_20 = arith.constant 0 : index
    %c0_21 = arith.constant 0 : index
    %c0_22 = arith.constant 0 : index
    %35 = vector.load %arg8[%c0_20, %c0_21, %c0_22] : memref<1x8x256xf32, #tpu.memory_space<vmem>>, vector<1x8x256xf32>
    %36 = vector.shape_cast %35 : vector<1x8x256xf32> to vector<8x256xf32>
    %37 = vector.shape_cast %34 : vector<8x256xf32> to vector<1x8x256xf32>
    tpu.vector_store %arg8[%c0_20, %c0_21, %c0_22], %37 {strides = array<i32>} : memref<1x8x256xf32, #tpu.memory_space<vmem>>, vector<1x8x256xf32>,
    return
  }
  func.func @transform_0(%arg0: i32, %arg1: i32) -> (i32, i32, i32) {
    %c0_i32 = arith.constant 0 : i32
    %c0_i32_0 = arith.constant 0 : i32
    return %arg0, %arg1, %c0_i32 : i32, i32, i32
  }
  func.func @transform_1(%arg0: i32, %arg1: i32) -> (i32, i32, i32) {
    %c0_i32 = arith.constant 0 : i32
    %c0_i32_0 = arith.constant 0 : i32
    %c0_i32_1 = arith.constant 0 : i32
    return %arg0, %c0_i32, %c0_i32_0 : i32, i32, i32
  }
  func.func @transform_2(%arg0: i32, %arg1: i32) -> (i32, i32) {
    %c0_i32 = arith.constant 0 : i32
    %c0_i32_0 = arith.constant 0 : i32
    return %arg1, %c0_i32 : i32, i32
  }
  func.func @transform_3(%arg0: i32, %arg1: i32) -> (i32, i32) {
    %c0_i32 = arith.constant 0 : i32
    %c0_i32_0 = arith.constant 0 : i32
    return %arg1, %c0_i32 : i32, i32
  }
  func.func @transform_4(%arg0: i32, %arg1: i32) -> (i32, i32) {
    %c0_i32 = arith.constant 0 : i32
    %c0_i32_0 = arith.constant 0 : i32
    return %arg1, %c0_i32 : i32, i32
  }
  func.func @transform_5(%arg0: i32, %arg1: i32) -> (i32, i32) {
    %c0_i32 = arith.constant 0 : i32
    %c0_i32_0 = arith.constant 0 : i32
    return %arg1, %c0_i32 : i32, i32
  }
  func.func @transform_6(%arg0: i32, %arg1: i32) -> (i32, i32, i32) {
    %c0_i32 = arith.constant 0 : i32
    %c0_i32_0 = arith.constant 0 : i32
    return %arg0, %arg1, %c0_i32 : i32, i32, i32
  }
}

</mosaic_0001>

<llo_original>
// kernel: adaptive_instance_norm.1
$region0: #{adaptive_instance_norm.1}
  #allocation0 [shape = 'u32[]', space=smem, size = 0x4, offset = 0x4, fixed_abs, tag = 'smem constant byte address 0x4 - core index']
  #allocation1 [shape = 'u32[144,128]{1,0:T(1,128)}', space=vmem, size = 0x12000, scoped, tag = 'internal scratch']
  %s0 = inlined_call_operand.vmem [shape: f32[2,8,256], index: 0, kind: input, shape index: {}]
  %s1 = inlined_call_operand.vmem [shape: f32[2,32,1], index: 1, kind: input, shape index: {}]
  %s2 = inlined_call_operand.vmem [shape: f32[8,32], index: 2, kind: input, shape index: {}]
  %s3 = inlined_call_operand.vmem [shape: f32[8,32], index: 3, kind: input, shape index: {}]
  %s4 = inlined_call_operand.vmem [shape: f32[8,1], index: 4, kind: input, shape index: {}]
  %s5 = inlined_call_operand.vmem [shape: f32[8,1], index: 5, kind: input, shape index: {}]
  %s6 = inlined_call_operand.vmem [shape: f32[2,8,256], index: 6, kind: output, shape index: {}]
  %s7 = sld [smem:[#allocation0]]
  $region57: #{adaptive_instance_norm.1} parent=0
    _
  %s9 = ssub.s32 1, %s7
  %s10 = scalar_select 0, %s9, %s7
  loop: start=0, step=1, limit=4
  $region2: #{adaptive_instance_norm.1} parent=0 // loop_pre_header
    _
  $region3: #{adaptive_instance_norm.1} parent=0 // loop_header
    %s12 = sphi 0, %s16
    %p13 = scmp.ge.s32.totalorder %s12, 4
    %s19 = sphi 0, %s31
    %s20 = sphi 0, %s27
    %s21 = sphi 0, %s19
    %s22 = sphi 0, %s20
    %s23 = sphi 0, %s21
    %s24 = sphi 0, %s22
    %s36 = sphi 0, %s38
    %s39 = sphi 0, %s36
    %s40 = sphi 0, %s39
    %s56 = sphi 0, %s40
    %s62 = sphi 0, %s64
    %s65 = sphi 0, %s62
    %s66 = sphi 0, %s65
    %s82 = sphi 0, %s66
    %s88 = sphi 0, %s90
    %s91 = sphi 0, %s88
    %s92 = sphi 0, %s91
    %s108 = sphi 0, %s92
    %s114 = sphi 0, %s116
    %s117 = sphi 0, %s114
    %s118 = sphi 0, %s117
    %s134 = sphi 0, %s118
    %s140 = sphi 0, %s142
    %s143 = sphi 0, %s140
    %s144 = sphi 0, %s143
    %s160 = sphi 0, %s144
    %s166 = sphi 0, %s168
    %s169 = sphi 0, %s166
    %s170 = sphi 0, %s169
    %s186 = sphi 0, %s170
    %s194 = sphi 0, %s196
    %s197 = sphi 0, %s194
    %s198 = sphi 0, %s197
    %s214 = sphi 0, %s198
  $region4: #{adaptive_instance_norm.1} parent=0 // loop_header_branch
    %15 = sbr.rel (%p13) target = $region8
  $region5: #{adaptive_instance_norm.1} parent=0 // loop_body
    %s17 = ssub.s32 %s12, 1
    %s18 = ssub.s32 %s12, 2
    %s25 = sadd.s32 1, %s20
    %p26 = scmp.ge.s32.totalorder %s25, 1
    %s27 = scalar_select %p26, 0, %s25
    %s28 = sadd.s32 1, %s19
    %s29 = scalar_select %p26, %s28, %s19
    %p30 = scmp.ge.s32.totalorder %s29, 2
    %s31 = scalar_select %p30, 0, %s29
    %s32 = ssub.s32 %s19, %s31
    %s33 = ssub.s32 %s20, %s27
    %s34 = sor.u32 %s32, %s33
    %p35 = scmp.eq.s32.totalorder %s34, 0
    %s37 = sadd.s32 %s36, 1
    %s38 = scalar_select %p35, %s36, %s37
    %p41 = pneg %p35
    %p42 = scmp.eq.s32.totalorder %s12, 1
    %p43 = por %p41, %p42
    %p44 = scmp.ne.s32.totalorder %s36, %s39
    %p45 = scmp.eq.s32.totalorder %s12, 0
    %p46 = por %p44, %p45
    %p47 = scmp.ne.s32.totalorder %s36, %s39
    %p48 = scmp.eq.s32.totalorder %s17, 1
    %p49 = por %p47, %p48
    %p50 = scmp.ne.s32.totalorder %s39, %s40
    %p51 = scmp.eq.s32.totalorder %s17, 0
    %p52 = por %p50, %p51
    %p53 = scmp.ne.s32.totalorder %s39, %s40
    %p54 = scmp.eq.s32.totalorder %s18, 1
    %p55 = por %p53, %p54
    %p57 = scmp.ne.s32.totalorder %s40, %s56
    %p58 = scmp.eq.s32.totalorder %s18, 0
    %p59 = por %p57, %p58
    %s60 = ssub.s32 %s19, %s31
    %p61 = scmp.eq.s32.totalorder %s60, 0
    %s63 = sadd.s32 %s62, 1
    %s64 = scalar_select %p61, %s62, %s63
    %p67 = pneg %p61
    %p68 = scmp.eq.s32.totalorder %s12, 1
    %p69 = por %p67, %p68
    %p70 = scmp.ne.s32.totalorder %s62, %s65
    %p71 = scmp.eq.s32.totalorder %s12, 0
    %p72 = por %p70, %p71
    %p73 = scmp.ne.s32.totalorder %s62, %s65
    %p74 = scmp.eq.s32.totalorder %s17, 1
    %p75 = por %p73, %p74
    %p76 = scmp.ne.s32.totalorder %s65, %s66
    %p77 = scmp.eq.s32.totalorder %s17, 0
    %p78 = por %p76, %p77
    %p79 = scmp.ne.s32.totalorder %s65, %s66
    %p80 = scmp.eq.s32.totalorder %s18, 1
    %p81 = por %p79, %p80
    %p83 = scmp.ne.s32.totalorder %s66, %s82
    %p84 = scmp.eq.s32.totalorder %s18, 0
    %p85 = por %p83, %p84
    %s86 = ssub.s32 %s20, %s27
    %p87 = scmp.eq.s32.totalorder %s86, 0
    %s89 = sadd.s32 %s88, 1
    %s90 = scalar_select %p87, %s88, %s89
    %p93 = pneg %p87
    %p94 = scmp.eq.s32.totalorder %s12, 1
    %p95 = por %p93, %p94
    %p96 = scmp.ne.s32.totalorder %s88, %s91
    %p97 = scmp.eq.s32.totalorder %s12, 0
    %p98 = por %p96, %p97
    %p99 = scmp.ne.s32.totalorder %s88, %s91
    %p100 = scmp.eq.s32.totalorder %s17, 1
    %p101 = por %p99, %p100
    %p102 = scmp.ne.s32.totalorder %s91, %s92
    %p103 = scmp.eq.s32.totalorder %s17, 0
    %p104 = por %p102, %p103
    %p105 = scmp.ne.s32.totalorder %s91, %s92
    %p106 = scmp.eq.s32.totalorder %s18, 1
    %p107 = por %p105, %p106
    %p109 = scmp.ne.s32.totalorder %s92, %s108
    %p110 = scmp.eq.s32.totalorder %s18, 0
    %p111 = por %p109, %p110
    %s112 = ssub.s32 %s20, %s27
    %p113 = scmp.eq.s32.totalorder %s112, 0
    %s115 = sadd.s32 %s114, 1
    %s116 = scalar_select %p113, %s114, %s115
    %p119 = pneg %p113
    %p120 = scmp.eq.s32.totalorder %s12, 1
    %p121 = por %p119, %p120
    %p122 = scmp.ne.s32.totalorder %s114, %s117
    %p123 = scmp.eq.s32.totalorder %s12, 0
    %p124 = por %p122, %p123
    %p125 = scmp.ne.s32.totalorder %s114, %s117
    %p126 = scmp.eq.s32.totalorder %s17, 1
    %p127 = por %p125, %p126
    %p128 = scmp.ne.s32.totalorder %s117, %s118
    %p129 = scmp.eq.s32.totalorder %s17, 0
    %p130 = por %p128, %p129
    %p131 = scmp.ne.s32.totalorder %s117, %s118
    %p132 = scmp.eq.s32.totalorder %s18, 1
    %p133 = por %p131, %p132
    %p135 = scmp.ne.s32.totalorder %s118, %s134
    %p136 = scmp.eq.s32.totalorder %s18, 0
    %p137 = por %p135, %p136
    %s138 = ssub.s32 %s20, %s27
    %p139 = scmp.eq.s32.totalorder %s138, 0
    %s141 = sadd.s32 %s140, 1
    %s142 = scalar_select %p139, %s140, %s141
    %p145 = pneg %p139
    %p146 = scmp.eq.s32.totalorder %s12, 1
    %p147 = por %p145, %p146
    %p148 = scmp.ne.s32.totalorder %s140, %s143
    %p149 = scmp.eq.s32.totalorder %s12, 0
    %p150 = por %p148, %p149
    %p151 = scmp.ne.s32.totalorder %s140, %s143
    %p152 = scmp.eq.s32.totalorder %s17, 1
    %p153 = por %p151, %p152
    %p154 = scmp.ne.s32.totalorder %s143, %s144
    %p155 = scmp.eq.s32.totalorder %s17, 0
    %p156 = por %p154, %p155
    %p157 = scmp.ne.s32.totalorder %s143, %s144
    %p158 = scmp.eq.s32.totalorder %s18, 1
    %p159 = por %p157, %p158
    %p161 = scmp.ne.s32.totalorder %s144, %s160
    %p162 = scmp.eq.s32.totalorder %s18, 0
    %p163 = por %p161, %p162
    %s164 = ssub.s32 %s20, %s27
    %p165 = scmp.eq.s32.totalorder %s164, 0
    %s167 = sadd.s32 %s166, 1
    %s168 = scalar_select %p165, %s166, %s167
    %p171 = pneg %p165
    %p172 = scmp.eq.s32.totalorder %s12, 1
    %p173 = por %p171, %p172
    %p174 = scmp.ne.s32.totalorder %s166, %s169
    %p175 = scmp.eq.s32.totalorder %s12, 0
    %p176 = por %p174, %p175
    %p177 = scmp.ne.s32.totalorder %s166, %s169
    %p178 = scmp.eq.s32.totalorder %s17, 1
    %p179 = por %p177, %p178
    %p180 = scmp.ne.s32.totalorder %s169, %s170
    %p181 = scmp.eq.s32.totalorder %s17, 0
    %p182 = por %p180, %p181
    %p183 = scmp.ne.s32.totalorder %s169, %s170
    %p184 = scmp.eq.s32.totalorder %s18, 1
    %p185 = por %p183, %p184
    %p187 = scmp.ne.s32.totalorder %s170, %s186
    %p188 = scmp.eq.s32.totalorder %s18, 0
    %p189 = por %p187, %p188
    %s190 = ssub.s32 %s19, %s31
    %s191 = ssub.s32 %s20, %s27
    %s192 = sor.u32 %s190, %s191
    %p193 = scmp.eq.s32.totalorder %s192, 0
    %s195 = sadd.s32 %s194, 1
    %s196 = scalar_select %p193, %s194, %s195
    %p199 = pneg %p193
    %p200 = scmp.eq.s32.totalorder %s12, 1
    %p201 = por %p199, %p200
    %p202 = scmp.ne.s32.totalorder %s194, %s197
    %p203 = scmp.eq.s32.totalorder %s12, 0
    %p204 = por %p202, %p203
    %p205 = scmp.ne.s32.totalorder %s194, %s197
    %p206 = scmp.eq.s32.totalorder %s17, 1
    %p207 = por %p205, %p206
    %p208 = scmp.ne.s32.totalorder %s197, %s198
    %p209 = scmp.eq.s32.totalorder %s17, 0
    %p210 = por %p208, %p209
    %p211 = scmp.ne.s32.totalorder %s197, %s198
    %p212 = scmp.eq.s32.totalorder %s18, 1
    %p213 = por %p211, %p212
    %p215 = scmp.ne.s32.totalorder %s198, %s214
    %p216 = scmp.eq.s32.totalorder %s18, 0
    %p217 = por %p215, %p216
    %p218 = scmp.le.s32.totalorder 1, %s12
    %p219 = scmp.lt.s32.totalorder %s12, 3
    %p220 = pnand %p218, %p219
    %p221 = pneg %p220
    // Predicated region
    $region9: #{adaptive_instance_norm.1} parent=5 // pred_check
      _
    $region10: #{adaptive_instance_norm.1} parent=5 // pred_check_branch
      %223 = sbr.rel (%p220) target = $region12
    $region11: #{adaptive_instance_norm.1} parent=5 // pred_region
      %s224 = ssub.s32 %s12, 1
      // Predicated region
      $region13: #{adaptive_instance_norm.1} parent=11 // pred_check
        %p225 = pneg %p104
      $region14: #{adaptive_instance_norm.1} parent=11 // pred_check_branch
        %227 = sbr.rel (%p225) target = $region16
      $region15: #{adaptive_instance_norm.1} parent=11 // pred_region
        %p228 = scmp.lt.s32.totalorder %s22, 0
        %s229 = scalar_select %p228, %s22, 0
        %s230 = smul.addr %s229, 8
        %s231 = scalar_lea.vmem %s2, %s230
      $region16: #{adaptive_instance_norm.1} parent=11 // pred_fallthru
        _
      // Predicated region
      $region17: #{adaptive_instance_norm.1} parent=11 // pred_check
        %p232 = pneg %p130
      $region18: #{adaptive_instance_norm.1} parent=11 // pred_check_branch
        %234 = sbr.rel (%p232) target = $region20
      $region19: #{adaptive_instance_norm.1} parent=11 // pred_region
        %p235 = scmp.lt.s32.totalorder %s22, 0
        %s236 = scalar_select %p235, %s22, 0
        %s237 = smul.addr %s236, 8
        %s238 = scalar_lea.vmem %s3, %s237
      $region20: #{adaptive_instance_norm.1} parent=11 // pred_fallthru
        _
      // Predicated region
      $region21: #{adaptive_instance_norm.1} parent=11 // pred_check
        %p239 = pneg %p156
      $region22: #{adaptive_instance_norm.1} parent=11 // pred_check_branch
        %241 = sbr.rel (%p239) target = $region24
      $region23: #{adaptive_instance_norm.1} parent=11 // pred_region
        %p242 = scmp.lt.s32.totalorder %s22, 0
        %s243 = scalar_select %p242, %s22, 0
        %s244 = smul.addr %s243, 8
        %s245 = scalar_lea.vmem %s4, %s244
      $region24: #{adaptive_instance_norm.1} parent=11 // pred_fallthru
        _
      // Predicated region
      $region25: #{adaptive_instance_norm.1} parent=11 // pred_check
        %p246 = pneg %p182
      $region26: #{adaptive_instance_norm.1} parent=11 // pred_check_branch
        %248 = sbr.rel (%p246) target = $region28
      $region27: #{adaptive_instance_norm.1} parent=11 // pred_region
        %p249 = scmp.lt.s32.totalorder %s22, 0
        %s250 = scalar_select %p249, %s22, 0
        %s251 = smul.addr %s250, 8
        %s252 = scalar_lea.vmem %s5, %s251
      $region28: #{adaptive_instance_norm.1} parent=11 // pred_fallthru
        _
    $region12: #{adaptive_instance_norm.1} parent=5 // pred_fallthru
      _
    %p253 = scmp.lt.s32.totalorder %s12, 2
    // Predicated region
    $region29: #{adaptive_instance_norm.1} parent=5 // pred_check
      %p254 = pneg %p253
    $region30: #{adaptive_instance_norm.1} parent=5 // pred_check_branch
      %256 = sbr.rel (%p254) target = $region32
    $region31: #{adaptive_instance_norm.1} parent=5 // pred_region
      // Predicated region
      $region33: #{adaptive_instance_norm.1} parent=31 // pred_check
        %p257 = pneg %p46
      $region34: #{adaptive_instance_norm.1} parent=31 // pred_check_branch
        %259 = sbr.rel (%p257) target = $region36
      $region35: #{adaptive_instance_norm.1} parent=31 // pred_region
        %p260 = scmp.lt.s32.totalorder %s19, 1
        %s261 = scalar_select %p260, %s19, 1
        %p262 = scmp.lt.s32.totalorder %s20, 0
        %s263 = scalar_select %p262, %s20, 0
        %s264 = smul.addr %s263, 2
        %s265 = smul.addr %s261, 2
        %s266 = sadd.s32 %s264, %s265
        %s267 = smul.addr %s266, 8
        %s268 = scalar_lea.vmem %s0, %s267
      $region36: #{adaptive_instance_norm.1} parent=31 // pred_fallthru
        _
      // Predicated region
      $region37: #{adaptive_instance_norm.1} parent=31 // pred_check
        %p269 = pneg %p72
      $region38: #{adaptive_instance_norm.1} parent=31 // pred_check_branch
        %271 = sbr.rel (%p269) target = $region40
      $region39: #{adaptive_instance_norm.1} parent=31 // pred_region
        %p272 = scmp.lt.s32.totalorder %s19, 1
        %s273 = scalar_select %p272, %s19, 1
        %s274 = smul.addr %s273, 4
        %s275 = smul.addr %s274, 8
        %s276 = scalar_lea.vmem %s1, %s275
      $region40: #{adaptive_instance_norm.1} parent=31 // pred_fallthru
        _
    $region32: #{adaptive_instance_norm.1} parent=5 // pred_fallthru
      _
    %p277 = scmp.le.s32.totalorder 1, %s12
    %p278 = scmp.lt.s32.totalorder %s12, 3
    %p279 = pnand %p277, %p278
    %p280 = pneg %p279
    // Predicated region
    $region41: #{adaptive_instance_norm.1} parent=5 // pred_check
      _
    $region42: #{adaptive_instance_norm.1} parent=5 // pred_check_branch
      %282 = sbr.rel (%p279) target = $region44
    $region43: #{adaptive_instance_norm.1} parent=5 // pred_region
      %s283 = ssub.s32 %s12, 1
      %p284 = scmp.lt.s32.totalorder %s21, 1
      %s285 = scalar_select %p284, %s21, 1
      %p286 = scmp.lt.s32.totalorder %s22, 0
      %s287 = scalar_select %p286, %s22, 0
      %s288 = smul.addr %s287, 2
      %s289 = smul.addr %s285, 2
      %s290 = sadd.s32 %s288, %s289
      %s291 = smul.addr %s290, 8
      %s292 = scalar_lea.vmem %s0, %s291
      %p293 = pneg %p52
      %p294 = pneg %p49
      %p295 = scmp.lt.s32.totalorder %s21, 1
      %s296 = scalar_select %p295, %s21, 1
      %s297 = smul.addr %s296, 4
      %s298 = smul.addr %s297, 8
      %s299 = scalar_lea.vmem %s1, %s298
      %p300 = pneg %p78
      %p301 = pneg %p75
      %p302 = scmp.lt.s32.totalorder %s22, 0
      %s303 = scalar_select %p302, %s22, 0
      %s304 = smul.addr %s303, 8
      %s305 = scalar_lea.vmem %s2, %s304
      %p306 = pneg %p104
      %p307 = pneg %p101
      %p308 = scmp.lt.s32.totalorder %s22, 0
      %s309 = scalar_select %p308, %s22, 0
      %s310 = smul.addr %s309, 8
      %s311 = scalar_lea.vmem %s3, %s310
      %p312 = pneg %p130
      %p313 = pneg %p127
      %p314 = scmp.lt.s32.totalorder %s22, 0
      %s315 = scalar_select %p314, %s22, 0
      %s316 = smul.addr %s315, 8
      %s317 = scalar_lea.vmem %s4, %s316
      %p318 = pneg %p156
      %p319 = pneg %p153
      %p320 = scmp.lt.s32.totalorder %s22, 0
      %s321 = scalar_select %p320, %s22, 0
      %s322 = smul.addr %s321, 8
      %s323 = scalar_lea.vmem %s5, %s322
      %p324 = pneg %p182
      %p325 = pneg %p179
      %p326 = pneg %p210
      %p327 = pneg %p207
      %p328 = scmp.lt.s32.totalorder %s21, 1
      %s329 = scalar_select %p328, %s21, 1
      %p330 = scmp.lt.s32.totalorder %s22, 0
      %s331 = scalar_select %p330, %s22, 0
      %s332 = smul.addr %s331, 2
      %s333 = smul.addr %s329, 2
      %s334 = sadd.s32 %s332, %s333
      %s335 = smul.addr %s334, 8
      %s336 = scalar_lea.vmem %s6, %s335
      %p337 = scmp.lt.s32.totalorder %s21, 1
      %s338 = scalar_select %p337, %s21, 1
      %p339 = scmp.lt.s32.totalorder %s22, 0
      %s340 = scalar_select %p339, %s22, 0
      %s341 = smul.addr %s340, 2
      %s342 = smul.addr %s338, 2
      %s343 = sadd.s32 %s341, %s342
      %s344 = smul.addr %s343, 8
      %s345 = scalar_lea.vmem %s0, %s344
      %p346 = scmp.lt.s32.totalorder %s21, 1
      %s347 = scalar_select %p346, %s21, 1
      %s348 = smul.addr %s347, 4
      %s349 = smul.addr %s348, 8
      %s350 = scalar_lea.vmem %s1, %s349
      %p351 = scmp.lt.s32.totalorder %s22, 0
      %s352 = scalar_select %p351, %s22, 0
      %s353 = smul.addr %s352, 8
      %s354 = scalar_lea.vmem %s2, %s353
      %p355 = scmp.lt.s32.totalorder %s22, 0
      %s356 = scalar_select %p355, %s22, 0
      %s357 = smul.addr %s356, 8
      %s358 = scalar_lea.vmem %s3, %s357
      %p359 = scmp.lt.s32.totalorder %s22, 0
      %s360 = scalar_select %p359, %s22, 0
      %s361 = smul.addr %s360, 8
      %s362 = scalar_lea.vmem %s4, %s361
      %p363 = scmp.lt.s32.totalorder %s22, 0
      %s364 = scalar_select %p363, %s22, 0
      %s365 = smul.addr %s364, 8
      %s366 = scalar_lea.vmem %s5, %s365
      %p367 = scmp.lt.s32.totalorder %s21, 1
      %s368 = scalar_select %p367, %s21, 1
      %p369 = scmp.lt.s32.totalorder %s22, 0
      %s370 = scalar_select %p369, %s22, 0
      %s371 = smul.addr %s370, 2
      %s372 = smul.addr %s368, 2
      %s373 = sadd.s32 %s371, %s372
      %s374 = smul.addr %s373, 8
      %s375 = scalar_lea.vmem %s6, %s374
      %v376 = vld [vmem:[%s345] sm:$0xff]
      %v377 = vld [vmem:[%s345 + $0x8] sm:$0xff]
      %v378 = vadd.f32 %v376, %v377
      %379 = vadd.xlane.f32.xlu0 %v378
      %v380 = vpop.xlane.xlu0 %379
      %v381 = vmul.f32 %v380, 0.00390625
      %v382 = vmul.f32 %v376, %v376
      %v383 = vmul.f32 %v377, %v377
      %v384 = vadd.f32 %v382, %v383
      %385 = vadd.xlane.f32.xlu0 %v384
      %v386 = vpop.xlane.xlu0 %385
      %v387 = vmul.f32 %v386, 0.00390625
      %v388 = vmul.f32 %v381, %v381
      %v389 = vsub.f32 %v387, %v388
      %v390 = vmax.f32 %v389, 0.0
      %v391 = vadd.f32 %v390, 1e-05
      %v392 = vrsqrt.pop %v391
      %v393 = vld [vmem:[%s350] sm:$0xff]
      %v394 = vld [vmem:[%s350 + $0x8] sm:$0xff]
      %v395 = vld [vmem:[%s350 + $0x10] sm:$0xff]
      %v396 = vld [vmem:[%s350 + $0x18] sm:$0xff]
      %v397 = vld [vmem:[%s354] sm:$0xff]
      %v398 = vld [vmem:[%s362] sm:$0xff]
      %vm399 = vcmask 261120
      %v401 = vsel %vm399, %v397, 0
      %403 = vmatprep.subr.mxu0 0.0
      %404 = vmatpush1.msra.mxu0 %v393
      %405 = vmatprep.subr.mxu0 0.0
      %406 = vmatpush1.msra.mxu0 %v394
      %407 = vmatprep.subr.mxu0 0.0
      %408 = vmatpush1.msra.mxu0 %v395
      %409 = vmatprep.subr.mxu0 0.0
      %410 = vmatpush1.msra.mxu0 %v396
      %411 = vmatprep.subr.mxu0 0.0
      %412 = vmatpush1.msra.mxu0 0.0
      %413 = vmatprep.subr.mxu0 0.0
      %414 = vmatpush1.msra.mxu0 0.0
      %415 = vmatprep.subr.mxu0 0.0
      %416 = vmatpush1.msra.mxu0 0.0
      %417 = vmatprep.subr.mxu0 0.0
      %418 = vmatpush1.msra.mxu0 0.0
      %419 = vmatprep.subr.mxu0 0.0
      %420 = vmatpush1.msra.mxu0 0.0
      %421 = vmatprep.subr.mxu0 0.0
      %422 = vmatpush1.msra.mxu0 0.0
      %423 = vmatprep.subr.mxu0 0.0
      %424 = vmatpush1.msra.mxu0 0.0
      %425 = vmatprep.subr.mxu0 0.0
      %426 = vmatpush1.msra.mxu0 0.0
      %427 = vmatprep.subr.mxu0 0.0
      %428 = vmatpush1.msra.mxu0 0.0
      %429 = vmatprep.subr.mxu0 0.0
      %430 = vmatpush1.msra.mxu0 0.0
      %431 = vmatprep.subr.mxu0 0.0
      %432 = vmatpush1.msra.mxu0 0.0
      %433 = vmatprep.subr.mxu0 0.0
      %434 = vmatpush1.msra.mxu0 0.0
      %435 = vmatprep.subr.mxu0 0.0
      %436 = vmatpush1.msra.mxu0 0.0
      %437 = vmatprep.subr.mxu0 0.0
      %438 = vmatpush1.msra.mxu0 0.0
      %439 = vmatprep.subr.mxu0 0.0
      %440 = vmatpush1.msra.mxu0 0.0
      %441 = vmatprep.subr.mxu0 0.0
      %442 = vmatpush1.msra.mxu0 0.0
      %443 = vmatprep.subr.mxu0 0.0
      %444 = vmatpush1.msra.mxu0 0.0
      %445 = vmatprep.subr.mxu0 0.0
      %446 = vmatpush1.msra.mxu0 0.0
      %447 = vmatprep.subr.mxu0 0.0
      %448 = vmatpush1.msra.mxu0 0.0
      %449 = vmatprep.subr.mxu0 0.0
      %450 = vmatpush1.msra.mxu0 0.0
      %451 = vmatprep.subr.mxu0 0.0
      %452 = vmatpush1.msra.mxu0 0.0
      %453 = vmatprep.subr.mxu0 0.0
      %454 = vmatpush1.msra.mxu0 0.0
      %455 = vmatprep.subr.mxu0 0.0
      %456 = vmatpush1.msra.mxu0 0.0
      %457 = vmatprep.subr.mxu0 0.0
      %458 = vmatpush1.msra.mxu0 0.0
      %459 = vmatprep.subr.mxu0 0.0
      %460 = vmatpush1.msra.mxu0 0.0
      %461 = vmatprep.subr.mxu0 0.0
      %462 = vmatpush1.msra.mxu0 0.0
      %463 = vmatprep.subr.mxu0 0.0
      %464 = vmatpush1.msra.mxu0 0.0
      %465 = vmatprep.subr.mxu0 0.0
      %466 = vmatpush1.msra.mxu0 0.0
      %467 = vmatprep.mubr.f32.mxu0 0.0
      %468 = vmatmul.mubr.f32.gmra.mrb[0].mxu0 %v401
      %v469 = vpop.f32.mrb[0].mxu0
      %v470 = vadd.f32 %v398, %v469
      %v471 = vpop.f32.mrb[0].mxu0
      %472 = vdwg.mxu0
      %v473 = vld [vmem:[%s358] sm:$0xff]
      %v474 = vld [vmem:[%s366] sm:$0xff]
      %v476 = vsel %vm399, %v473, 0
      %478 = vmatprep.subr.mxu0 0.0
      %479 = vmatpush1.msra.mxu0 %v393
      %480 = vmatprep.subr.mxu0 0.0
      %481 = vmatpush1.msra.mxu0 %v394
      %482 = vmatprep.subr.mxu0 0.0
      %483 = vmatpush1.msra.mxu0 %v395
      %484 = vmatprep.subr.mxu0 0.0
      %485 = vmatpush1.msra.mxu0 %v396
      %486 = vmatprep.subr.mxu0 0.0
      %487 = vmatpush1.msra.mxu0 0.0
      %488 = vmatprep.subr.mxu0 0.0
      %489 = vmatpush1.msra.mxu0 0.0
      %490 = vmatprep.subr.mxu0 0.0
      %491 = vmatpush1.msra.mxu0 0.0
      %492 = vmatprep.subr.mxu0 0.0
      %493 = vmatpush1.msra.mxu0 0.0
      %494 = vmatprep.subr.mxu0 0.0
      %495 = vmatpush1.msra.mxu0 0.0
      %496 = vmatprep.subr.mxu0 0.0
      %497 = vmatpush1.msra.mxu0 0.0
      %498 = vmatprep.subr.mxu0 0.0
      %499 = vmatpush1.msra.mxu0 0.0
      %500 = vmatprep.subr.mxu0 0.0
      %501 = vmatpush1.msra.mxu0 0.0
      %502 = vmatprep.subr.mxu0 0.0
      %503 = vmatpush1.msra.mxu0 0.0
      %504 = vmatprep.subr.mxu0 0.0
      %505 = vmatpush1.msra.mxu0 0.0
      %506 = vmatprep.subr.mxu0 0.0
      %507 = vmatpush1.msra.mxu0 0.0
      %508 = vmatprep.subr.mxu0 0.0
      %509 = vmatpush1.msra.mxu0 0.0
      %510 = vmatprep.subr.mxu0 0.0
      %511 = vmatpush1.msra.mxu0 0.0
      %512 = vmatprep.subr.mxu0 0.0
      %513 = vmatpush1.msra.mxu0 0.0
      %514 = vmatprep.subr.mxu0 0.0
      %515 = vmatpush1.msra.mxu0 0.0
      %516 = vmatprep.subr.mxu0 0.0
      %517 = vmatpush1.msra.mxu0 0.0
      %518 = vmatprep.subr.mxu0 0.0
      %519 = vmatpush1.msra.mxu0 0.0
      %520 = vmatprep.subr.mxu0 0.0
      %521 = vmatpush1.msra.mxu0 0.0
      %522 = vmatprep.subr.mxu0 0.0
      %523 = vmatpush1.msra.mxu0 0.0
      %524 = vmatprep.subr.mxu0 0.0
      %525 = vmatpush1.msra.mxu0 0.0
      %526 = vmatprep.subr.mxu0 0.0
      %527 = vmatpush1.msra.mxu0 0.0
      %528 = vmatprep.subr.mxu0 0.0
      %529 = vmatpush1.msra.mxu0 0.0
      %530 = vmatprep.subr.mxu0 0.0
      %531 = vmatpush1.msra.mxu0 0.0
      %532 = vmatprep.subr.mxu0 0.0
      %533 = vmatpush1.msra.mxu0 0.0
      %534 = vmatprep.subr.mxu0 0.0
      %535 = vmatpush1.msra.mxu0 0.0
      %536 = vmatprep.subr.mxu0 0.0
      %537 = vmatpush1.msra.mxu0 0.0
      %538 = vmatprep.subr.mxu0 0.0
      %539 = vmatpush1.msra.mxu0 0.0
      %540 = vmatprep.subr.mxu0 0.0
      %541 = vmatpush1.msra.mxu0 0.0
      %542 = vmatprep.mubr.f32.mxu0 0.0
      %543 = vmatmul.mubr.f32.gmra.mrb[0].mxu0 %v476
      %v544 = vpop.f32.mrb[0].mxu0
      %v545 = vadd.f32 %v474, %v544
      %v546 = vpop.f32.mrb[0].mxu0
      %547 = vdwg.mxu0
      %v548 = vmul.f32 %v470, %v392
      %v549 = vmul.f32 %v381, %v548
      %v550 = vsub.f32 %v545, %v549
      %552 = vset.pattern.permute.xlu0 0
      %553 = vperm.xlu0 %552, %v548
      %v554 = vpop.permute.xlu0 %553
      %v556 = vmul.f32 %v376, %v554
      %v557 = vmul.f32 %v377, %v554
      %559 = vset.pattern.permute.xlu0 0
      %560 = vperm.xlu0 %559, %v550
      %v561 = vpop.permute.xlu0 %560
      %v563 = vadd.f32 %v556, %v561
      %v564 = vadd.f32 %v557, %v561
      %565 = vst [vmem:[%s375] sm:$0xff] %v563
      %566 = vst [vmem:[%s375 + $0x8] sm:$0xff] %v564
      %p567 = scmp.lt.s32.totalorder %s21, 1
      %s568 = scalar_select %p567, %s21, 1
      %p569 = scmp.lt.s32.totalorder %s22, 0
      %s570 = scalar_select %p569, %s22, 0
      %s571 = smul.addr %s570, 2
      %s572 = smul.addr %s568, 2
      %s573 = sadd.s32 %s571, %s572
      %s574 = smul.addr %s573, 8
      %s575 = scalar_lea.vmem %s6, %s574
      // Predicated region
      $region45: #{adaptive_instance_norm.1} parent=43 // pred_check
        %p576 = pneg %p207
      $region46: #{adaptive_instance_norm.1} parent=43 // pred_check_branch
        %578 = sbr.rel (%p576) target = $region48
      $region47: #{adaptive_instance_norm.1} parent=43 // pred_region
        _
      $region48: #{adaptive_instance_norm.1} parent=43 // pred_fallthru
        _
    $region44: #{adaptive_instance_norm.1} parent=5 // pred_fallthru
      _
    %p579 = scmp.le.s32.totalorder 2, %s12
    // Predicated region
    $region49: #{adaptive_instance_norm.1} parent=5 // pred_check
      %p580 = pneg %p579
    $region50: #{adaptive_instance_norm.1} parent=5 // pred_check_branch
      %582 = sbr.rel (%p580) target = $region52
    $region51: #{adaptive_instance_norm.1} parent=5 // pred_region
      %s583 = ssub.s32 %s12, 2
      // Predicated region
      $region53: #{adaptive_instance_norm.1} parent=51 // pred_check
        %p584 = pneg %p213
      $region54: #{adaptive_instance_norm.1} parent=51 // pred_check_branch
        %586 = sbr.rel (%p584) target = $region56
      $region55: #{adaptive_instance_norm.1} parent=51 // pred_region
        %p587 = scmp.lt.s32.totalorder %s23, 1
        %s588 = scalar_select %p587, %s23, 1
        %p589 = scmp.lt.s32.totalorder %s24, 0
        %s590 = scalar_select %p589, %s24, 0
        %s591 = smul.addr %s590, 2
        %s592 = smul.addr %s588, 2
        %s593 = sadd.s32 %s591, %s592
        %s594 = smul.addr %s593, 8
        %s595 = scalar_lea.vmem %s6, %s594
      $region56: #{adaptive_instance_norm.1} parent=51 // pred_fallthru
        _
    $region52: #{adaptive_instance_norm.1} parent=5 // pred_fallthru
      _
  $region6: #{adaptive_instance_norm.1} parent=0 // loop_footer
    %s16 = sadd.s32 1, %s12
  $region7: #{adaptive_instance_norm.1} parent=0 // loop_footer_branch
    %11 = sbr.rel target = $region3
  $region8: #{adaptive_instance_norm.1} parent=0 // loop_exit
    _

</llo_original>
